<compile_context>
chip_gen: v6e
topology: v6e:2x2x1
jax: 0.10.0
libtpu: 0.0.40
codegen_flags: <defaults>
</compile_context>

<pallas_src>
import math

import jax
import jax.numpy as jnp
from jax.experimental import pallas as pl
from jax.experimental.pallas import tpu as pltpu


def _round_up(x, m):
    return ((x + m - 1) // m) * m


def value_network_kernel(x_ref, w1_ref, b1_ref, w2_ref, b2_ref, w3_ref, b3_ref,
                         o_ref):
    """One batch tile of the MLP. x_ref: (TB, D_in) f32; weights resident in VMEM."""
    # Layer 1: bf16 MXU matmul, f32 accumulate, f32 bias + ReLU.
    x = x_ref[...].astype(jnp.bfloat16)                               # (TB, D_in)
    h1 = jnp.dot(x, w1_ref[...], preferred_element_type=jnp.float32)  # (TB, H) f32
    h1 = jnp.maximum(h1 + b1_ref[...], 0.0)

    # Layer 2: same pattern.
    h2 = jnp.dot(h1.astype(jnp.bfloat16), w2_ref[...],
                 preferred_element_type=jnp.float32)                  # (TB, H) f32
    h2 = jnp.maximum(h2 + b2_ref[...], 0.0)

    # Layer 3: single-row contraction  (1,H) x (TB,H) -> (1,TB)  -> lane-dense result,
    # no N=1 result slab and no relayout before the store.
    v = jax.lax.dot_general(
        w3_ref[...], h2,
        dimension_numbers=(((1,), (1,)), ((), ())),
        preferred_element_type=jnp.float32)                           # (1, TB)
    o_ref[...] = (v + b3_ref[0, 0]).astype(o_ref.dtype)


def value_network_forward(state, params, *, block_b=1024):
    """state: (B, num_inputs) f32.  Returns (B, 1) f32."""
    w1, b1, w2, b2, w3, b3 = params
    B, d_in = state.shape
    H = w1.shape[1]

    # Batch tile: multiple of 8 sublanes; multiple of 128 lanes for the output block
    # whenever more than one grid step is needed.
    if B >= block_b:
        tb = block_b                      # block_b is a multiple of 128
    else:
        tb = _round_up(max(B, 1), 8)      # single tile covering the (padded) batch
    b_pad = _round_up(B, tb)
    grid = (pl.cdiv(b_pad, tb),)

    if b_pad != B:
        state = jnp.pad(state, ((0, b_pad - B), (0, 0)))

    # Weights on the MXU bf16 fast path; biases / W3 stay f32.
    w1b = w1.astype(jnp.bfloat16)
    w2b = w2.astype(jnp.bfloat16)

    out = pl.pallas_call(
        value_network_kernel,
        out_shape=jax.ShapeDtypeStruct((1, b_pad), jnp.float32),      # batch on lanes
        grid=grid,
        in_specs=[
            pl.BlockSpec((tb, d_in), lambda i: (i, 0)),               # state tile (streamed)
            pl.BlockSpec((d_in, H), lambda i: (0, 0)),                # W1 (VMEM-resident)
            pl.BlockSpec((1, H), lambda i: (0, 0)),                   # b1
            pl.BlockSpec((H, H), lambda i: (0, 0)),                   # W2
            pl.BlockSpec((1, H), lambda i: (0, 0)),                   # b2
            pl.BlockSpec((1, H), lambda i: (0, 0)),                   # W3 row
            pl.BlockSpec(memory_space=pltpu.MemorySpace.SMEM),        # b3 scalar
        ],
        out_specs=pl.BlockSpec((1, tb), lambda i: (0, i)),            # lane-dense output
        compiler_params=pltpu.CompilerParams(
            dimension_semantics=("parallel",),                        # 2 TCs on v7x
            vmem_limit_bytes=32 * 1024 * 1024,
        ),
    )(state, w1b, b1, w2, b2, w3, b3)

    # (1, b_pad) -> (b_pad, 1) is a pure reshape (same linear order); drop the padding.
    return out.reshape(b_pad, 1)[:B]


# ----------------------------- parameter initialization -----------------------------

def xavier_uniform(key, fan_in, fan_out, gain=1.0):
    """torch.nn.init.xavier_uniform_ equivalent, stored as (in_features, out_features)."""
    bound = gain * math.sqrt(6.0 / (fan_in + fan_out))
    return jax.random.uniform(key, (fan_in, fan_out), dtype=jnp.float32,
                              minval=-bound, maxval=bound)


def init_value_network_params(key, num_inputs, hidden_dim):
    """Mirrors ValueNetwork.__init__: xavier weights + zero bias for linear1/2,
    linear3 weight and bias zero-filled.  W3 is kept in PyTorch layout (1, H)."""
    k1, k2 = jax.random.split(key, 2)
    w1 = xavier_uniform(k1, num_inputs, hidden_dim)          # (D_in, H)
    b1 = jnp.zeros((1, hidden_dim), jnp.float32)
    w2 = xavier_uniform(k2, hidden_dim, hidden_dim)          # (H, H)
    b2 = jnp.zeros((1, hidden_dim), jnp.float32)
    w3 = jnp.zeros((1, hidden_dim), jnp.float32)             # zero-filled per module
    b3 = jnp.zeros((1, 1), jnp.float32)
    return (w1, b1, w2, b2, w3, b3)


def init_full_random_params(key, num_inputs, hidden_dim):
    """Non-zero linear3 so the correctness check exercises the whole kernel path."""
    k1, k2, k3, k4 = jax.random.split(key, 4)
    w1 = xavier_uniform(k1, num_inputs, hidden_dim)
    b1 = 0.05 * jax.random.normal(k2, (1, hidden_dim), dtype=jnp.float32)
    w2 = xavier_uniform(k3, hidden_dim, hidden_dim)
    b2 = jnp.zeros((1, hidden_dim), jnp.float32)
    w3 = 0.1 * jax.random.normal(k4, (1, hidden_dim), dtype=jnp.float32)
    b3 = jnp.full((1, 1), 0.01, jnp.float32)
    return (w1, b1, w2, b2, w3, b3)


# ----------------------------------- reference -----------------------------------

def value_network_ref(state, params):
    """Pure-JAX reference replicating the kernel's numerics (bf16 dot inputs, f32 accum)."""
    w1, b1, w2, b2, w3, b3 = params
    h1 = jnp.maximum(
        jnp.dot(state.astype(jnp.bfloat16), w1.astype(jnp.bfloat16),
                preferred_element_type=jnp.float32) + b1, 0.0)
    h2 = jnp.maximum(
        jnp.dot(h1.astype(jnp.bfloat16), w2.astype(jnp.bfloat16),
                preferred_element_type=jnp.float32) + b2, 0.0)
    return jnp.sum(h2 * w3, axis=-1, keepdims=True) + b3              # (B, 1) f32


if __name__ == "__main__":
    key = jax.random.PRNGKey(0)
    k_param, k_state, k_full, k_state2 = jax.random.split(key, 4)

    batch = 2
    num_inputs = 4
    hidden_dim = 32

    # 1) Faithful ValueNetwork init (linear3 zero-filled) at the module's small sizes.
    params = init_value_network_params(k_param, num_inputs, hidden_dim)
    state = jax.random.normal(k_state, (batch, num_inputs), dtype=jnp.float32)
    out = jax.block_until_ready(value_network_forward(state, params))
    ref = value_network_ref(state, params)
    assert out.shape == (batch, 1), out.shape
    assert jnp.allclose(out, ref, atol=1e-5, rtol=1e-5), (out, ref)

    # 2) Non-zero linear3 + a batch that is not a multiple of the tile, multi-step grid
    #    (exercises padding, the batch grid, and the lane-dense output path).
    full_params = init_full_random_params(k_full, num_inputs, hidden_dim)
    state2 = jax.random.normal(k_state2, (300, num_inputs), dtype=jnp.float32)
    out2 = jax.block_until_ready(
        value_network_forward(state2, full_params, block_b=128))
    ref2 = value_network_ref(state2, full_params)
    assert out2.shape == (300, 1), out2.shape
    assert jnp.allclose(out2, ref2, atol=2e-3, rtol=2e-3), (out2, ref2)

    print("KERNEL_OK")
</pallas_src>

<mosaic_0001>
module attributes {stable_mosaic.version = 11 : i64} {
  func.func @value_network_kernel(%arg0: i32, %arg1: memref<8x4xf32, #tpu.memory_space<vmem>>, %arg2: memref<4x32xbf16, #tpu.memory_space<vmem>>, %arg3: memref<1x32xf32, #tpu.memory_space<vmem>>, %arg4: memref<32x32xf32, #tpu.memory_space<vmem>>, %arg5: memref<1x32xf32, #tpu.memory_space<vmem>>, %arg6: memref<1x32xf32, #tpu.memory_space<vmem>>, %arg7: memref<1x1xf32, #tpu.memory_space<smem>>, %arg8: memref<1x8xf32, #tpu.memory_space<vmem>>) attributes {dimension_semantics = [#tpu.dimension_semantics<parallel>], iteration_bounds = array<i64: 1>, scalar_prefetch = 0 : i64, scratch_operands = 0 : i64, tpu.core_type = #tpu.core_type<tc>, window_params = [{transform_indices = @transform_0, window_bounds = array<i64: 8, 4>}, {pipeline_mode = #tpu.pipeline_mode<synchronous>, transform_indices = @transform_1, window_bounds = array<i64: 4, 32>}, {pipeline_mode = #tpu.pipeline_mode<synchronous>, transform_indices = @transform_2, window_bounds = array<i64: 1, 32>}, {pipeline_mode = #tpu.pipeline_mode<synchronous>, transform_indices = @transform_3, window_bounds = array<i64: 32, 32>}, {pipeline_mode = #tpu.pipeline_mode<synchronous>, transform_indices = @transform_4, window_bounds = array<i64: 1, 32>}, {pipeline_mode = #tpu.pipeline_mode<synchronous>, transform_indices = @transform_5, window_bounds = array<i64: 1, 32>}, {transform_indices = @transform_6, window_bounds = array<i64: 1, 1>}, {transform_indices = @transform_7, window_bounds = array<i64: 1, 8>}]} {
    %c0 = arith.constant 0 : index
    %c0_0 = arith.constant 0 : index
    %0 = vector.load %arg1[%c0, %c0_0] : memref<8x4xf32, #tpu.memory_space<vmem>>, vector<8x4xf32>
    %1 = arith.truncf %0 : vector<8x4xf32> to vector<8x4xbf16>
    %c0_1 = arith.constant 0 : index
    %c0_2 = arith.constant 0 : index
    %2 = vector.load %arg2[%c0_1, %c0_2] : memref<4x32xbf16, #tpu.memory_space<vmem>>, vector<4x32xbf16>
    %cst = arith.constant dense<0.000000e+00> : vector<8x32xf32>
    %3 = tpu.matmul %1, %2, %cst {dimension_numbers = #tpu.dot_dimension_numbers<[1], [0], [0], [1], [0, 0, 1, 1], [], []>} : vector<8x4xbf16>, vector<4x32xbf16>, vector<8x32xf32> -> vector<8x32xf32>
    %c0_3 = arith.constant 0 : index
    %c0_4 = arith.constant 0 : index
    %4 = vector.load %arg3[%c0_3, %c0_4] : memref<1x32xf32, #tpu.memory_space<vmem>>, vector<1x32xf32>
    %5 = vector.broadcast %4 : vector<1x32xf32> to vector<8x32xf32>
    %6 = arith.addf %3, %5 : vector<8x32xf32>
    %cst_5 = arith.constant 0.000000e+00 : f32
    %7 = vector.broadcast %cst_5 : f32 to vector<8x32xf32>
    %8 = arith.maximumf %6, %7 : vector<8x32xf32>
    %9 = arith.truncf %8 : vector<8x32xf32> to vector<8x32xbf16>
    %c0_6 = arith.constant 0 : index
    %c0_7 = arith.constant 0 : index
    %10 = vector.load %arg4[%c0_6, %c0_7] : memref<32x32xf32, #tpu.memory_space<vmem>>, vector<32x32xf32>
    %cst_8 = arith.constant dense<0.000000e+00> : vector<8x32xf32>
    %11 = tpu.matmul %9, %10, %cst_8 {dimension_numbers = #tpu.dot_dimension_numbers<[1], [0], [0], [1], [0, 0, 1, 1], [], []>} : vector<8x32xbf16>, vector<32x32xf32>, vector<8x32xf32> -> vector<8x32xf32>
    %c0_9 = arith.constant 0 : index
    %c0_10 = arith.constant 0 : index
    %12 = vector.load %arg5[%c0_9, %c0_10] : memref<1x32xf32, #tpu.memory_space<vmem>>, vector<1x32xf32>
    %13 = vector.broadcast %12 : vector<1x32xf32> to vector<8x32xf32>
    %14 = arith.addf %11, %13 : vector<8x32xf32>
    %cst_11 = arith.constant 0.000000e+00 : f32
    %15 = vector.broadcast %cst_11 : f32 to vector<8x32xf32>
    %16 = arith.maximumf %14, %15 : vector<8x32xf32>
    %c0_12 = arith.constant 0 : index
    %c0_13 = arith.constant 0 : index
    %17 = vector.load %arg6[%c0_12, %c0_13] : memref<1x32xf32, #tpu.memory_space<vmem>>, vector<1x32xf32>
    %cst_14 = arith.constant dense<0.000000e+00> : vector<1x8xf32>
    %18 = tpu.matmul %17, %16, %cst_14 {dimension_numbers = #tpu.dot_dimension_numbers<[1], [1], [0], [0], [0, 0, 1, 0], [], []>} : vector<1x32xf32>, vector<8x32xf32>, vector<1x8xf32> -> vector<1x8xf32>
    %c0_15 = arith.constant 0 : index
    %c0_16 = arith.constant 0 : index
    %19 = memref.load %arg7[%c0_15, %c0_16] : memref<1x1xf32, #tpu.memory_space<smem>>
    %20 = vector.broadcast %19 : f32 to vector<1x8xf32>
    %21 = arith.addf %18, %20 : vector<1x8xf32>
    %c0_17 = arith.constant 0 : index
    %c0_18 = arith.constant 0 : index
    %22 = vector.load %arg8[%c0_17, %c0_18] : memref<1x8xf32, #tpu.memory_space<vmem>>, vector<1x8xf32>
    tpu.vector_store %arg8[%c0_17, %c0_18], %21 {strides = array<i32>} : memref<1x8xf32, #tpu.memory_space<vmem>>, vector<1x8xf32>,
    return
  }
  func.func @transform_0(%arg0: i32) -> (i32, i32) {
    %c0_i32 = arith.constant 0 : i32
    %c0_i32_0 = arith.constant 0 : i32
    return %arg0, %c0_i32 : i32, i32
  }
  func.func @transform_1(%arg0: i32) -> (i32, i32) {
    %c0_i32 = arith.constant 0 : i32
    %c0_i32_0 = arith.constant 0 : i32
    %c0_i32_1 = arith.constant 0 : i32
    return %c0_i32, %c0_i32_0 : i32, i32
  }
  func.func @transform_2(%arg0: i32) -> (i32, i32) {
    %c0_i32 = arith.constant 0 : i32
    %c0_i32_0 = arith.constant 0 : i32
    %c0_i32_1 = arith.constant 0 : i32
    return %c0_i32, %c0_i32_0 : i32, i32
  }
  func.func @transform_3(%arg0: i32) -> (i32, i32) {
    %c0_i32 = arith.constant 0 : i32
    %c0_i32_0 = arith.constant 0 : i32
    %c0_i32_1 = arith.constant 0 : i32
    return %c0_i32, %c0_i32_0 : i32, i32
  }
  func.func @transform_4(%arg0: i32) -> (i32, i32) {
    %c0_i32 = arith.constant 0 : i32
    %c0_i32_0 = arith.constant 0 : i32
    %c0_i32_1 = arith.constant 0 : i32
    return %c0_i32, %c0_i32_0 : i32, i32
  }
  func.func @transform_5(%arg0: i32) -> (i32, i32) {
    %c0_i32 = arith.constant 0 : i32
    %c0_i32_0 = arith.constant 0 : i32
    %c0_i32_1 = arith.constant 0 : i32
    return %c0_i32, %c0_i32_0 : i32, i32
  }
  func.func @transform_6(%arg0: i32) -> (i32, i32) {
    %c0_i32 = arith.constant 0 : i32
    %c0_i32_0 = arith.constant 0 : i32
    %c0_i32_1 = arith.constant 0 : i32
    return %c0_i32, %c0_i32_0 : i32, i32
  }
  func.func @transform_7(%arg0: i32) -> (i32, i32) {
    %c0_i32 = arith.constant 0 : i32
    %c0_i32_0 = arith.constant 0 : i32
    return %c0_i32, %arg0 : i32, i32
  }
}

</mosaic_0001>

<llo_original>
// kernel: tpu_custom_call.1
$region0: #{tpu_custom_call.1}
  #allocation0 [shape = 'u32[]', space=smem, size = 0x4, offset = 0x4, fixed_abs, tag = 'smem constant byte address 0x4 - core index']
  #allocation1 [shape = 'u32[144,128]{1,0:T(1,128)}', space=vmem, size = 0x12000, scoped, tag = 'internal scratch']
  #allocation2 [shape = 'f32[1,1]{1,0:T(1,128)S(6)}', space=smem, size = 0x200, scoped, tag = 'scoped memory for tpu_custom_call.1']
  %s0 = inlined_call_operand.vmem [shape: f32[8,4], index: 0, kind: input, shape index: {}]
  %s1 = inlined_call_operand.vmem [shape: bf16[4,32], index: 1, kind: input, shape index: {}]
  %s2 = inlined_call_operand.vmem [shape: f32[1,32], index: 2, kind: input, shape index: {}]
  %s3 = inlined_call_operand.hbm [shape: f32[32,32], index: 3, kind: input, shape index: {}]
  %s4 = inlined_call_operand.vmem [shape: f32[1,32], index: 4, kind: input, shape index: {}]
  %s5 = inlined_call_operand.vmem [shape: f32[1,32], index: 5, kind: input, shape index: {}]
  %s6 = inlined_call_operand.<no memory space> [shape: f32[1,1], index: 6, kind: input, shape index: {}]
  %s7 = inlined_call_operand.hbm [shape: f32[1,8], index: 7, kind: output, shape index: {}]
  %s8 = sld [smem:[#allocation0]]
  $region42: #{tpu_custom_call.1} parent=0
    _
  %s10 = ssub.s32 1, %s8
  %s11 = scalar_select 0, %s10, %s8
  %12 = sst [smem:[#allocation2]] %s6
  $region1: #{tpu_custom_call.1} parent=0
    #allocation3 [shape = 'u8[16384]{0}', space=vmem, size = 0x4000, scoped, tag = 'input window, operand 3, single buffered']
    #allocation4 [shape = 's32[1]{0}', space=sflag, size = 0x4, scoped, tag = 'scoped memory for tpu_custom_call.1']
    #allocation5 [shape = 's32[1]{0}', space=sflag, size = 0x4, scoped, tag = 'scoped memory for tpu_custom_call.1']
    #allocation6 [shape = 'u8[512]{0}', space=vmem, size = 0x400, scoped, tag = 'output window, operand 0, single buffered']
    %13 = vsyncpa [#allocation4], 0
    %14 = vsyncpa [#allocation5], 0
    // Predicated region
    $region2: #{tpu_custom_call.1} parent=1 // pred_check
      _
    $region3: #{tpu_custom_call.1} parent=1 // pred_check_branch
      %16 = sbr.rel (0) target = $region5
    $region4: #{tpu_custom_call.1} parent=1 // pred_region
      _
    $region5: #{tpu_custom_call.1} parent=1 // pred_fallthru
      _
    // Predicated region
    $region6: #{tpu_custom_call.1} parent=1 // pred_check
      _
    $region7: #{tpu_custom_call.1} parent=1 // pred_check_branch
      %18 = sbr.rel (0) target = $region9
    $region8: #{tpu_custom_call.1} parent=1 // pred_region
      _
    $region9: #{tpu_custom_call.1} parent=1 // pred_fallthru
      _
    // Predicated region
    $region10: #{tpu_custom_call.1} parent=1 // pred_check
      _
    $region11: #{tpu_custom_call.1} parent=1 // pred_check_branch
      %20 = sbr.rel (0) target = $region13
    $region12: #{tpu_custom_call.1} parent=1 // pred_region
      _
    $region13: #{tpu_custom_call.1} parent=1 // pred_fallthru
      _
    // Predicated region
    $region14: #{tpu_custom_call.1} parent=1 // pred_check
      _
    $region15: #{tpu_custom_call.1} parent=1 // pred_check_branch
      %22 = sbr.rel (0) target = $region17
    $region16: #{tpu_custom_call.1} parent=1 // pred_region
      %s24 = ssub.s32 512, 512
      %25 = vsyncadd [#allocation4], %s24
      %s26 = sshll.u32 [#allocation3], 4
      %s27 = int_to_ptr.vmem [resolvable:$true] %s26
      %32 = dma.hbm_to_vmem [thread:$0]  %s3, 512, %s27, [#allocation4], 128, 128, 8
    $region17: #{tpu_custom_call.1} parent=1 // pred_fallthru
      _
    // Predicated region
    $region18: #{tpu_custom_call.1} parent=1 // pred_check
      _
    $region19: #{tpu_custom_call.1} parent=1 // pred_check_branch
      %34 = sbr.rel (0) target = $region21
    $region20: #{tpu_custom_call.1} parent=1 // pred_region
      _
    $region21: #{tpu_custom_call.1} parent=1 // pred_fallthru
      _
    // Predicated region
    $region22: #{tpu_custom_call.1} parent=1 // pred_check
      _
    $region23: #{tpu_custom_call.1} parent=1 // pred_check_branch
      %36 = sbr.rel (0) target = $region25
    $region24: #{tpu_custom_call.1} parent=1 // pred_region
      _
    $region25: #{tpu_custom_call.1} parent=1 // pred_fallthru
      _
    // Predicated region
    $region26: #{tpu_custom_call.1} parent=1 // pred_check
      _
    $region27: #{tpu_custom_call.1} parent=1 // pred_check_branch
      %38 = sbr.rel (0) target = $region29
    $region28: #{tpu_custom_call.1} parent=1 // pred_region
      _
    $region29: #{tpu_custom_call.1} parent=1 // pred_fallthru
      _
    // Predicated region
    $region30: #{tpu_custom_call.1} parent=1 // pred_check
      _
    $region31: #{tpu_custom_call.1} parent=1 // pred_check_branch
      %40 = sbr.rel (0) target = $region33
    $region32: #{tpu_custom_call.1} parent=1 // pred_region
      %41 = dma.done [#allocation4], 512
    $region33: #{tpu_custom_call.1} parent=1 // pred_fallthru
      _
    %v43 = vld [vmem:[%s0] sm:$0xff]
    %v44 = vpack.c.bf16 %v43, %v43
    %v45 = vld [vmem:[%s1] sm:$0x3]
    %v46 = vld [vmem:[%s2] sm:$0x1]
    %v48 = vlaneseq
    %v49 = vshrl.u32 %v48, 7
    %v50 = vsub.s32 0, %v49
    %v51 = vrot.slane %v46, %v50
    %vm53 = vcmask 31744
    %v55 = vsel %vm53, %v44, 0
    %vm57 = vcmask 1041408
    %v59 = vsel %vm57, %v45, 0
    %61 = vmatprep.subr.bf16.mxu0 0
    %62 = vmatpush1.bf16.msra.mxu0 0
    %63 = vmatprep.subr.bf16.mxu0 0
    %64 = vmatpush1.bf16.msra.mxu0 0
    %65 = vmatprep.subr.bf16.mxu0 0
    %66 = vmatpush1.bf16.msra.mxu0 0
    %67 = vmatprep.subr.bf16.mxu0 0
    %68 = vmatpush1.bf16.msra.mxu0 0
    %69 = vmatprep.subr.bf16.mxu0 0
    %70 = vmatpush1.bf16.msra.mxu0 0
    %71 = vmatprep.subr.bf16.mxu0 0
    %72 = vmatpush1.bf16.msra.mxu0 0
    %73 = vmatprep.subr.bf16.mxu0 0
    %74 = vmatpush1.bf16.msra.mxu0 0
    %75 = vmatprep.subr.bf16.mxu0 0
    %76 = vmatpush1.bf16.msra.mxu0 %v59
    %77 = vmatprep.subr.bf16.mxu0 0
    %78 = vmatpush2.bf16.msra.mxu0 0
    %79 = vmatprep.subr.bf16.mxu0 0
    %80 = vmatpush2.bf16.msra.mxu0 0
    %81 = vmatprep.subr.bf16.mxu0 0
    %82 = vmatpush2.bf16.msra.mxu0 0
    %83 = vmatprep.subr.bf16.mxu0 0
    %84 = vmatpush2.bf16.msra.mxu0 0
    %85 = vmatprep.subr.bf16.mxu0 0
    %86 = vmatpush2.bf16.msra.mxu0 0
    %87 = vmatprep.subr.bf16.mxu0 0
    %88 = vmatpush2.bf16.msra.mxu0 0
    %89 = vmatprep.subr.bf16.mxu0 0
    %90 = vmatpush2.bf16.msra.mxu0 0
    %91 = vmatprep.subr.bf16.mxu0 0
    %92 = vmatpush2.bf16.msra.mxu0 0
    %93 = vmatprep.mubr.bf16.mxu0 0
    %94 = vmatmul.mubr.bf16.gmra.mxu0 %v55
    %v95 = vpop.f32.mrf.mxu0
    %v96 = vadd.f32 %v51, %v95
    %v97 = vpop.f32.mrf.mxu0
    %v98 = vpop.f32.mrf.mxu0
    %v99 = vpop.f32.mrf.mxu0
    %100 = vdwg.mxu0
    %v101 = vmax.f32 %v96, 0.0
    %v102 = vpack.c.bf16 %v101, %v101
    %v103 = vld [vmem:[#allocation3] sm:$0xff]
    %v104 = vld [vmem:[#allocation3 + $0x8] sm:$0xff]
    %v105 = vld [vmem:[#allocation3 + $0x10] sm:$0xff]
    %v106 = vld [vmem:[#allocation3 + $0x18] sm:$0xff]
    %v107 = vld [vmem:[%s4] sm:$0x1]
    %v109 = vlaneseq
    %v110 = vshrl.u32 %v109, 7
    %v111 = vsub.s32 0, %v110
    %v112 = vrot.slane %v107, %v111
    %vm114 = vcmask 261120
    %v116 = vsel %vm114, %v102, 0
    %118 = vmatprep.subr.mxu0 0.0
    %119 = vmatpush1.msra.mxu0 0.0
    %120 = vmatprep.subr.mxu0 0.0
    %121 = vmatpush1.msra.mxu0 0.0
    %122 = vmatprep.subr.mxu0 0.0
    %123 = vmatpush1.msra.mxu0 0.0
    %124 = vmatprep.subr.mxu0 0.0
    %125 = vmatpush1.msra.mxu0 0.0
    %126 = vmatprep.subr.mxu0 0.0
    %127 = vmatpush1.msra.mxu0 0.0
    %128 = vmatprep.subr.mxu0 0.0
    %129 = vmatpush1.msra.mxu0 0.0
    %130 = vmatprep.subr.mxu0 0.0
    %131 = vmatpush1.msra.mxu0 0.0
    %132 = vmatprep.subr.mxu0 0.0
    %133 = vmatpush1.msra.mxu0 0.0
    %134 = vmatprep.subr.mxu0 0.0
    %135 = vmatpush1.msra.mxu0 0.0
    %136 = vmatprep.subr.mxu0 0.0
    %137 = vmatpush1.msra.mxu0 0.0
    %138 = vmatprep.subr.mxu0 0.0
    %139 = vmatpush1.msra.mxu0 0.0
    %140 = vmatprep.subr.mxu0 0.0
    %141 = vmatpush1.msra.mxu0 0.0
    %142 = vmatprep.subr.mxu0 0.0
    %143 = vmatpush1.msra.mxu0 %v106
    %144 = vmatprep.subr.mxu0 0.0
    %145 = vmatpush1.msra.mxu0 %v105
    %146 = vmatprep.subr.mxu0 0.0
    %147 = vmatpush1.msra.mxu0 %v104
    %148 = vmatprep.subr.mxu0 0.0
    %149 = vmatpush1.msra.mxu0 %v103
    %150 = vmatprep.subr.mxu0 0.0
    %151 = vmatpush2.msra.mxu0 0.0
    %152 = vmatprep.subr.mxu0 0.0
    %153 = vmatpush2.msra.mxu0 0.0
    %154 = vmatprep.subr.mxu0 0.0
    %155 = vmatpush2.msra.mxu0 0.0
    %156 = vmatprep.subr.mxu0 0.0
    %157 = vmatpush2.msra.mxu0 0.0
    %158 = vmatprep.subr.mxu0 0.0
    %159 = vmatpush2.msra.mxu0 0.0
    %160 = vmatprep.subr.mxu0 0.0
    %161 = vmatpush2.msra.mxu0 0.0
    %162 = vmatprep.subr.mxu0 0.0
    %163 = vmatpush2.msra.mxu0 0.0
    %164 = vmatprep.subr.mxu0 0.0
    %165 = vmatpush2.msra.mxu0 0.0
    %166 = vmatprep.subr.mxu0 0.0
    %167 = vmatpush2.msra.mxu0 0.0
    %168 = vmatprep.subr.mxu0 0.0
    %169 = vmatpush2.msra.mxu0 0.0
    %170 = vmatprep.subr.mxu0 0.0
    %171 = vmatpush2.msra.mxu0 0.0
    %172 = vmatprep.subr.mxu0 0.0
    %173 = vmatpush2.msra.mxu0 0.0
    %174 = vmatprep.subr.mxu0 0.0
    %175 = vmatpush2.msra.mxu0 0.0
    %176 = vmatprep.subr.mxu0 0.0
    %177 = vmatpush2.msra.mxu0 0.0
    %178 = vmatprep.subr.mxu0 0.0
    %179 = vmatpush2.msra.mxu0 0.0
    %180 = vmatprep.subr.mxu0 0.0
    %181 = vmatpush2.msra.mxu0 0.0
    %182 = vmatprep.mubr.bf16.mxu0 0
    %183 = vmatmul.mubr.bf16.gmra.mxu0 %v116
    %v184 = vpop.f32.mrf.mxu0
    %v185 = vadd.f32 %v112, %v184
    %v186 = vpop.f32.mrf.mxu0
    %v187 = vpop.f32.mrf.mxu0
    %v188 = vpop.f32.mrf.mxu0
    %189 = vdwg.mxu0
    %v190 = vmax.f32 %v185, 0.0
    %v191 = vld [vmem:[%s5] sm:$0x1]
    %s192 = sld [smem:[#allocation2]]
    %v193 = vstv %s192
    %v195 = vsel %vm114, %v191, 0
    %v198 = vsel %vm114, %v190, 0
    %200 = vmatprep.subr.mxu0 0.0
    %201 = vmatpush1.xpose.msra.mxu0 0.0
    %202 = vmatprep.subr.mxu0 0.0
    %203 = vmatpush1.xpose.msra.mxu0 0.0
    %204 = vmatprep.subr.mxu0 0.0
    %205 = vmatpush1.xpose.msra.mxu0 0.0
    %206 = vmatprep.subr.mxu0 0.0
    %207 = vmatpush1.xpose.msra.mxu0 0.0
    %208 = vmatprep.subr.mxu0 0.0
    %209 = vmatpush1.xpose.msra.mxu0 0.0
    %210 = vmatprep.subr.mxu0 0.0
    %211 = vmatpush1.xpose.msra.mxu0 0.0
    %212 = vmatprep.subr.mxu0 0.0
    %213 = vmatpush1.xpose.msra.mxu0 0.0
    %214 = vmatprep.subr.mxu0 0.0
    %215 = vmatpush1.xpose.msra.mxu0 0.0
    %216 = vmatprep.subr.mxu0 0.0
    %217 = vmatpush1.xpose.msra.mxu0 0.0
    %218 = vmatprep.subr.mxu0 0.0
    %219 = vmatpush1.xpose.msra.mxu0 0.0
    %220 = vmatprep.subr.mxu0 0.0
    %221 = vmatpush1.xpose.msra.mxu0 0.0
    %222 = vmatprep.subr.mxu0 0.0
    %223 = vmatpush1.xpose.msra.mxu0 0.0
    %224 = vmatprep.subr.mxu0 0.0
    %225 = vmatpush1.xpose.msra.mxu0 0.0
    %226 = vmatprep.subr.mxu0 0.0
    %227 = vmatpush1.xpose.msra.mxu0 0.0
    %228 = vmatprep.subr.mxu0 0.0
    %229 = vmatpush1.xpose.msra.mxu0 0.0
    %230 = vmatprep.subr.mxu0 0.0
    %231 = vmatpush1.xpose.msra.mxu0 %v198
    %232 = vmatprep.subr.mxu0 0.0
    %233 = vmatpush2.xpose.msra.mxu0 0.0
    %234 = vmatprep.subr.mxu0 0.0
    %235 = vmatpush2.xpose.msra.mxu0 0.0
    %236 = vmatprep.subr.mxu0 0.0
    %237 = vmatpush2.xpose.msra.mxu0 0.0
    %238 = vmatprep.subr.mxu0 0.0
    %239 = vmatpush2.xpose.msra.mxu0 0.0
    %240 = vmatprep.subr.mxu0 0.0
    %241 = vmatpush2.xpose.msra.mxu0 0.0
    %242 = vmatprep.subr.mxu0 0.0
    %243 = vmatpush2.xpose.msra.mxu0 0.0
    %244 = vmatprep.subr.mxu0 0.0
    %245 = vmatpush2.xpose.msra.mxu0 0.0
    %246 = vmatprep.subr.mxu0 0.0
    %247 = vmatpush2.xpose.msra.mxu0 0.0
    %248 = vmatprep.subr.mxu0 0.0
    %249 = vmatpush2.xpose.msra.mxu0 0.0
    %250 = vmatprep.subr.mxu0 0.0
    %251 = vmatpush2.xpose.msra.mxu0 0.0
    %252 = vmatprep.subr.mxu0 0.0
    %253 = vmatpush2.xpose.msra.mxu0 0.0
    %254 = vmatprep.subr.mxu0 0.0
    %255 = vmatpush2.xpose.msra.mxu0 0.0
    %256 = vmatprep.subr.mxu0 0.0
    %257 = vmatpush2.xpose.msra.mxu0 0.0
    %258 = vmatprep.subr.mxu0 0.0
    %259 = vmatpush2.xpose.msra.mxu0 0.0
    %260 = vmatprep.subr.mxu0 0.0
    %261 = vmatpush2.xpose.msra.mxu0 0.0
    %262 = vmatprep.subr.mxu0 0.0
    %263 = vmatpush2.xpose.msra.mxu0 0.0
    %264 = vmatprep.mubr.f32.mxu0 0.0
    %265 = vmatmul.mubr.f32.gmra.mxu0 %v195
    %v266 = vpop.f32.mrf.mxu0
    %v267 = vadd.f32 %v193, %v266
    %v268 = vpop.f32.mrf.mxu0
    %269 = vdwg.mxu0
    %vm270 = vcmask 57344
    %271 = vst.msk [vmem:[#allocation6] sm:$0x1] %vm270, %v267
    // Predicated region
    $region34: #{tpu_custom_call.1} parent=1 // pred_check
      _
    $region35: #{tpu_custom_call.1} parent=1 // pred_check_branch
      %273 = sbr.rel (0) target = $region37
    $region36: #{tpu_custom_call.1} parent=1 // pred_region
      %s275 = ssub.s32 16, 16
      %276 = vsyncadd [#allocation5], %s275
      %s278 = sshll.u32 [#allocation6], 4
      %s279 = int_to_ptr.vmem [resolvable:$true] %s278
      %281 = dma.vmem_to_hbm [thread:$0]  %s279, 16, %s7, [#allocation5]
    $region37: #{tpu_custom_call.1} parent=1 // pred_fallthru
      _
    // Predicated region
    $region38: #{tpu_custom_call.1} parent=1 // pred_check
      _
    $region39: #{tpu_custom_call.1} parent=1 // pred_check_branch
      %283 = sbr.rel (0) target = $region41
    $region40: #{tpu_custom_call.1} parent=1 // pred_region
      %284 = dma.done [#allocation5], 16
    $region41: #{tpu_custom_call.1} parent=1 // pred_fallthru
      _
    %285 = vsyncpa [#allocation4], 1
    %286 = vsyncpa [#allocation5], 1

</llo_original>
